<compile_context>
chip_gen: v7x
topology: tpu7x:2x2x1
jax: 0.10.0
libtpu: 0.0.40
codegen_flags: <defaults>
</compile_context>

<pallas_src>
import functools

import jax
import jax.numpy as jnp
from jax.experimental import pallas as pl
from jax.experimental.pallas import tpu as pltpu


# Tile caps (chosen to fill the 256-wide MXUs on v6e/v7x while keeping the
# double-buffered footprint <= ~12 MiB, i.e. safe on v7x's 64 MiB VMEM).
_O_CAP = 256        # max output-channel tile
_P_CAP = 1024       # max Ho*Wo tile (lane dim)
_K_FULL_CAP = 2048  # contract C*K*K in one grid step if padded size <= this
_K_TILE = 512       # contraction tile when C*K*K is larger than _K_FULL_CAP


def _round_up(x, m):
    return ((x + m - 1) // m) * m


def _pick_divisor_tile(total, cap, quantum):
    """Largest multiple of `quantum` that divides `total` and is <= `cap`."""
    assert total % quantum == 0
    units = total // quantum
    best = 1
    d = 1
    while d * d <= units:
        if units % d == 0:
            for cand in (d, units // d):
                if cand * quantum <= cap and cand > best:
                    best = cand
        d += 1
    return best * quantum


# ----------------------------------------------------------------------------
# Pallas kernel: tiled masked-weight matmul + bias (conv-as-matmul)
# ----------------------------------------------------------------------------
def _flgc_matmul_kernel(w_ref, p_ref, b_ref, o_ref):
    # w_ref: (TO, TK)      bf16  masked+flattened conv-weight tile
    # p_ref: (1, TK, TP)   bf16  im2col patches tile for batch n
    # b_ref: (TO, 1)       f32   bias
    # o_ref: (1, TO, TP)   f32   output tile, accumulated in place across k
    #                            (its block index is constant over the k axis,
    #                             so it stays VMEM-resident -> no scratch).
    k = pl.program_id(3)

    @pl.when(k == 0)
    def _():
        o_ref[0] = jnp.broadcast_to(b_ref[...], o_ref.shape[1:])

    o_ref[0] += jnp.dot(w_ref[...], p_ref[0],
                        preferred_element_type=jnp.float32)


def _flgc_matmul(w2d, patches, bias2d, tile_o, tile_p, tile_k):
    # w2d:     (O_pad, CKK_pad)     bf16
    # patches: (N, CKK_pad, P_pad)  bf16
    # bias2d:  (O_pad, 1)           f32
    # returns  (N, O_pad, P_pad)    f32
    O_pad, CKK_pad = w2d.shape
    N, _, P_pad = patches.shape
    grid = (N, O_pad // tile_o, P_pad // tile_p, CKK_pad // tile_k)

    return pl.pallas_call(
        _flgc_matmul_kernel,
        out_shape=jax.ShapeDtypeStruct((N, O_pad, P_pad), jnp.float32),
        grid_spec=pltpu.PrefetchScalarGridSpec(
            num_scalar_prefetch=0,
            grid=grid,
            in_specs=[
                pl.BlockSpec((tile_o, tile_k), lambda n, i, j, k: (i, k)),
                pl.BlockSpec((1, tile_k, tile_p), lambda n, i, j, k: (n, k, j)),
                pl.BlockSpec((tile_o, 1), lambda n, i, j, k: (i, 0)),
            ],
            out_specs=pl.BlockSpec((1, tile_o, tile_p),
                                   lambda n, i, j, k: (n, i, j)),
        ),
        compiler_params=pltpu.CompilerParams(
            dimension_semantics=("parallel", "parallel", "parallel", "arbitrary"),
            vmem_limit_bytes=32 << 20,
        ),
    )(w2d, patches, bias2d)


# ----------------------------------------------------------------------------
# Plain-JAX glue (tiny group-assignment math + bf16 patch extraction)
# ----------------------------------------------------------------------------
def _binarize(probs):
    # (probs == max(probs, dim=1, keepdim=True)).float()  -- ties -> multiple 1s,
    # matching the PyTorch forward.
    return (probs == jnp.max(probs, axis=1, keepdims=True)).astype(jnp.float32)


def _group_mask(out_map, in_map):
    out_bin = _binarize(jax.nn.softmax(out_map, axis=1))   # (O, G)
    in_bin = _binarize(jax.nn.softmax(in_map, axis=1))     # (C, G)
    return out_bin @ in_bin.T                               # (O, C)


def _im2col_nchw(x, K, stride, padding, dilation):
    # x: (N, C, H, W) (already bf16) -> patches (N, C*K*K, Ho*Wo),
    # (c, kh, kw)-major, matching weight.reshape(O, C*K*K).  Built directly in
    # the target layout (slices + stack + reshape; no full-array transpose).
    N, C, H, W = x.shape
    if padding > 0:
        x = jnp.pad(x, ((0, 0), (0, 0), (padding, padding), (padding, padding)))
    Hp = H + 2 * padding
    Wp = W + 2 * padding
    Ho = (Hp - dilation * (K - 1) - 1) // stride + 1
    Wo = (Wp - dilation * (K - 1) - 1) // stride + 1
    cols = []
    for kh in range(K):
        for kw in range(K):
            h0 = kh * dilation
            w0 = kw * dilation
            cols.append(
                x[:, :, h0:h0 + stride * Ho:stride, w0:w0 + stride * Wo:stride])
    cols = jnp.stack(cols, axis=2)                 # (N, C, K*K, Ho, Wo)
    return cols.reshape(N, C * K * K, Ho * Wo), Ho, Wo


@functools.partial(jax.jit, static_argnames=("stride", "padding", "dilation"))
def flgc2d_share_forward(x, weight, bias, in_group_map, out_group_map,
                         stride=1, padding=0, dilation=1):
    """x: (N, C, H, W) NCHW; weight: (O, C, K, K) OIHW; returns (N, O, Ho, Wo)."""
    N = x.shape[0]
    O, C, K, _ = weight.shape
    CKK = C * K * K

    # Group mask, applied once to the (tiny) weight -> no mask DMA in the kernel.
    mask = _group_mask(out_group_map, in_group_map)                    # (O, C)
    w_masked = (weight * mask[:, :, None, None]).reshape(O, CKK)       # (O, CKK)

    # im2col directly in bf16 (halves wrapper HBM traffic of the 9x patches).
    patches, Ho, Wo = _im2col_nchw(x.astype(jnp.bfloat16),
                                   K, stride, padding, dilation)       # (N,CKK,HW)
    HW = Ho * Wo

    # ---- tile / padding selection -------------------------------------
    # Contraction (C*K*K): single-step contraction whenever it fits -> the
    # weight block index is constant across n/j (no weight re-DMA) and only
    # sublane (x8) alignment is needed (usually zero padding).
    if CKK <= _K_FULL_CAP:
        CKK_pad = _round_up(CKK, 8)
        tile_k = CKK_pad
    else:
        tile_k = _K_TILE
        CKK_pad = _round_up(CKK, tile_k)

    # Output channels: keep the whole O panel resident when it is small.
    if O <= _O_CAP:
        O_pad = _round_up(O, 8)
        tile_o = O_pad
    else:
        tile_o = _O_CAP
        O_pad = _round_up(O, tile_o)

    # Spatial (Ho*Wo): full-extent block when it fits the cap -> no padding of
    # the 9x patches tensor and no post-kernel slice copy; otherwise pad to a
    # 128 multiple and tile with a divisor (lane-dense stores).
    if HW <= _P_CAP:
        HW_pad = HW
        tile_p = HW
    else:
        HW_pad = _round_up(HW, 128)
        tile_p = _pick_divisor_tile(HW_pad, _P_CAP, 128)

    # v7x has 2 TensorCores: make sure the "parallel" grid has >= 2 work units.
    if N * (O_pad // tile_o) * (HW_pad // tile_p) < 2 and HW > 128:
        HW_pad = _round_up(HW, 256)
        tile_p = HW_pad // 2

    # ---- pad operands only when actually required ----------------------
    w_p = w_masked.astype(jnp.bfloat16)
    if O_pad != O or CKK_pad != CKK:
        w_p = jnp.pad(w_p, ((0, O_pad - O), (0, CKK_pad - CKK)))
    p_p = patches
    if CKK_pad != CKK or HW_pad != HW:
        p_p = jnp.pad(p_p, ((0, 0), (0, CKK_pad - CKK), (0, HW_pad - HW)))
    b_p = bias.astype(jnp.float32)
    if O_pad != O:
        b_p = jnp.pad(b_p, (0, O_pad - O))
    b_p = b_p.reshape(O_pad, 1)

    out = _flgc_matmul(w_p, p_p, b_p, tile_o, tile_p, tile_k)   # (N,O_pad,HW_pad)
    if O_pad != O or HW_pad != HW:
        out = out[:, :O, :HW]
    return out.reshape(N, O, Ho, Wo)                            # free reshape


# ----------------------------------------------------------------------------
# Reference (pure JAX) for sanity checking
# ----------------------------------------------------------------------------
def flgc2d_share_reference(x, weight, bias, in_group_map, out_group_map,
                           stride=1, padding=0, dilation=1):
    mask = _group_mask(out_group_map, in_group_map)
    w = weight * mask[:, :, None, None]
    y = jax.lax.conv_general_dilated(
        x, w,
        window_strides=(stride, stride),
        padding=[(padding, padding), (padding, padding)],
        rhs_dilation=(dilation, dilation),
        dimension_numbers=("NCHW", "OIHW", "NCHW"))
    return y + bias[None, :, None, None]


# ----------------------------------------------------------------------------
# Main
# ----------------------------------------------------------------------------
if __name__ == "__main__":
    # Module configuration (implied by WEIGHT shape and defaults).
    N, C, H, W = 2, 8, 16, 16      # input NCHW
    O, K = 16, 3                   # out_channels, kernel_size
    G = 4                          # groups
    stride, padding, dilation = 1, 0, 1

    key = jax.random.PRNGKey(0)
    k_x, k_w, k_b, k_in, k_out = jax.random.split(key, 5)

    x = jax.random.normal(k_x, (N, C, H, W), dtype=jnp.float32)
    weight = jax.random.normal(k_w, (O, C, K, K), dtype=jnp.float32) * 0.1
    bias = jax.random.normal(k_b, (O,), dtype=jnp.float32) * 0.1
    in_group_map = jax.random.normal(k_in, (C, G), dtype=jnp.float32)
    out_group_map = jax.random.normal(k_out, (O, G), dtype=jnp.float32)

    y = flgc2d_share_forward(x, weight, bias, in_group_map, out_group_map,
                             stride=stride, padding=padding, dilation=dilation)
    y = jax.block_until_ready(y)

    y_ref = flgc2d_share_reference(x, weight, bias, in_group_map, out_group_map,
                                   stride=stride, padding=padding, dilation=dilation)
    y_ref = jax.block_until_ready(y_ref)

    assert y.shape == (N, O, H - K + 1, W - K + 1), y.shape
    # bf16 MXU operands with f32 accumulation vs a pure-f32 reference ->
    # loosened tolerance.
    assert jnp.allclose(y, y_ref, atol=5e-2, rtol=5e-2), \
        float(jnp.max(jnp.abs(y - y_ref)))

    print("KERNEL_OK")
</pallas_src>

<mosaic_0001>
module attributes {stable_mosaic.version = 11 : i64} {
  func.func @_flgc_matmul_kernel(%arg0: i32, %arg1: i32, %arg2: i32, %arg3: i32, %arg4: memref<16x72xbf16, #tpu.memory_space<vmem>>, %arg5: memref<1x72x196xbf16, #tpu.memory_space<vmem>>, %arg6: memref<16x1xf32, #tpu.memory_space<vmem>>, %arg7: memref<1x16x196xf32, #tpu.memory_space<vmem>>) attributes {dimension_semantics = [#tpu.dimension_semantics<parallel>, #tpu.dimension_semantics<parallel>, #tpu.dimension_semantics<parallel>, #tpu.dimension_semantics<arbitrary>], iteration_bounds = array<i64: 2, 1, 1, 1>, scalar_prefetch = 0 : i64, scratch_operands = 0 : i64, tpu.core_type = #tpu.core_type<tc>, window_params = [{transform_indices = @transform_0, window_bounds = array<i64: 16, 72>}, {transform_indices = @transform_1, window_bounds = array<i64: 1, 72, 196>}, {transform_indices = @transform_2, window_bounds = array<i64: 16, 1>}, {transform_indices = @transform_3, window_bounds = array<i64: 1, 16, 196>}]} {
    %c0_i32 = arith.constant 0 : i32
    %0 = arith.cmpi eq, %arg3, %c0_i32 : i32
    %1 = arith.extui %0 : i1 to i32
    %c0_i32_0 = arith.constant 0 : i32
    %2 = arith.cmpi ne, %1, %c0_i32_0 : i32
    scf.if %2 {
      %c0_11 = arith.constant 0 : index
      %c0_12 = arith.constant 0 : index
      %13 = vector.load %arg6[%c0_11, %c0_12] : memref<16x1xf32, #tpu.memory_space<vmem>>, vector<16x1xf32>
      %14 = vector.shape_cast %13 : vector<16x1xf32> to vector<16x1xf32>
      %15 = vector.broadcast %14 : vector<16x1xf32> to vector<16x196xf32>
      %c0_13 = arith.constant 0 : index
      %c0_14 = arith.constant 0 : index
      %c0_15 = arith.constant 0 : index
      %16 = vector.load %arg7[%c0_13, %c0_14, %c0_15] : memref<1x16x196xf32, #tpu.memory_space<vmem>>, vector<1x16x196xf32>
      %17 = vector.shape_cast %16 : vector<1x16x196xf32> to vector<16x196xf32>
      %18 = vector.shape_cast %15 : vector<16x196xf32> to vector<1x16x196xf32>
      tpu.vector_store %arg7[%c0_13, %c0_14, %c0_15], %18 {strides = array<i32>} : memref<1x16x196xf32, #tpu.memory_space<vmem>>, vector<1x16x196xf32>,
    } else {
    }
    %c0 = arith.constant 0 : index
    %c0_1 = arith.constant 0 : index
    %c0_2 = arith.constant 0 : index
    %3 = vector.load %arg7[%c0, %c0_1, %c0_2] : memref<1x16x196xf32, #tpu.memory_space<vmem>>, vector<1x16x196xf32>
    %4 = vector.shape_cast %3 : vector<1x16x196xf32> to vector<16x196xf32>
    %c0_3 = arith.constant 0 : index
    %c0_4 = arith.constant 0 : index
    %5 = vector.load %arg4[%c0_3, %c0_4] : memref<16x72xbf16, #tpu.memory_space<vmem>>, vector<16x72xbf16>
    %c0_5 = arith.constant 0 : index
    %c0_6 = arith.constant 0 : index
    %c0_7 = arith.constant 0 : index
    %6 = vector.load %arg5[%c0_5, %c0_6, %c0_7] : memref<1x72x196xbf16, #tpu.memory_space<vmem>>, vector<1x72x196xbf16>
    %7 = vector.shape_cast %6 : vector<1x72x196xbf16> to vector<72x196xbf16>
    %cst = arith.constant dense<0.000000e+00> : vector<16x196xf32>
    %8 = tpu.matmul %5, %7, %cst {dimension_numbers = #tpu.dot_dimension_numbers<[1], [0], [0], [1], [0, 0, 1, 1], [], []>} : vector<16x72xbf16>, vector<72x196xbf16>, vector<16x196xf32> -> vector<16x196xf32>
    %9 = arith.addf %4, %8 : vector<16x196xf32>
    %c0_8 = arith.constant 0 : index
    %c0_9 = arith.constant 0 : index
    %c0_10 = arith.constant 0 : index
    %10 = vector.load %arg7[%c0_8, %c0_9, %c0_10] : memref<1x16x196xf32, #tpu.memory_space<vmem>>, vector<1x16x196xf32>
    %11 = vector.shape_cast %10 : vector<1x16x196xf32> to vector<16x196xf32>
    %12 = vector.shape_cast %9 : vector<16x196xf32> to vector<1x16x196xf32>
    tpu.vector_store %arg7[%c0_8, %c0_9, %c0_10], %12 {strides = array<i32>} : memref<1x16x196xf32, #tpu.memory_space<vmem>>, vector<1x16x196xf32>,
    return
  }
  func.func @transform_0(%arg0: i32, %arg1: i32, %arg2: i32, %arg3: i32) -> (i32, i32) {
    %c0_i32 = arith.constant 0 : i32
    return %arg1, %arg3 : i32, i32
  }
  func.func @transform_1(%arg0: i32, %arg1: i32, %arg2: i32, %arg3: i32) -> (i32, i32, i32) {
    %c0_i32 = arith.constant 0 : i32
    return %arg0, %arg3, %arg2 : i32, i32, i32
  }
  func.func @transform_2(%arg0: i32, %arg1: i32, %arg2: i32, %arg3: i32) -> (i32, i32) {
    %c0_i32 = arith.constant 0 : i32
    %c0_i32_0 = arith.constant 0 : i32
    return %arg1, %c0_i32 : i32, i32
  }
  func.func @transform_3(%arg0: i32, %arg1: i32, %arg2: i32, %arg3: i32) -> (i32, i32, i32) {
    %c0_i32 = arith.constant 0 : i32
    return %arg0, %arg1, %arg2 : i32, i32, i32
  }
}

</mosaic_0001>

<llo_original>
// kernel: flgc2d_share_forward.1
$region0: #{flgc2d_share_forward.1}
  #allocation0 [shape = 'u32[]', space=smem, size = 0x4, offset = 0x4, fixed_abs, tag = 'smem constant byte address 0x4 - core index']
  #allocation1 [shape = 'u32[144,128]{1,0:T(1,128)}', space=vmem, size = 0x12000, scoped, tag = 'internal scratch']
  %s0 = inlined_call_operand.vmem [shape: bf16[16,72], index: 0, kind: input, shape index: {}]
  %s1 = inlined_call_operand.vmem [shape: bf16[2,72,196], index: 1, kind: input, shape index: {}]
  %s2 = inlined_call_operand.vmem [shape: f32[16,1], index: 2, kind: input, shape index: {}]
  %s3 = inlined_call_operand.vmem [shape: f32[2,16,196], index: 3, kind: output, shape index: {}]
  %s4 = sld [smem:[#allocation0]]
  $region49: #{flgc2d_share_forward.1} parent=0
    _
  %s6 = ssub.s32 1, %s4
  %s7 = scalar_select 0, %s6, %s4
  loop: start=0, step=1, limit=4
  $region2: #{flgc2d_share_forward.1} parent=0 // loop_pre_header
    _
  $region3: #{flgc2d_share_forward.1} parent=0 // loop_header
    %s9 = sphi 0, %s13
    %p10 = scmp.ge.s32.totalorder %s9, 4
    %s16 = sphi 0, %s42
    %s17 = sphi 0, %s38
    %s18 = sphi 0, %s34
    %s19 = sphi 0, %s30
    %s20 = sphi 0, %s16
    %s21 = sphi 0, %s17
    %s22 = sphi 0, %s18
    %s23 = sphi 0, %s19
    %s24 = sphi 0, %s20
    %s25 = sphi 0, %s21
    %s26 = sphi 0, %s22
    %s27 = sphi 0, %s23
    %s47 = sphi 0, %s49
    %s50 = sphi 0, %s47
    %s51 = sphi 0, %s50
    %s67 = sphi 0, %s51
    %s77 = sphi 0, %s79
    %s80 = sphi 0, %s77
    %s81 = sphi 0, %s80
    %s97 = sphi 0, %s81
    %s103 = sphi 0, %s105
    %s106 = sphi 0, %s103
    %s107 = sphi 0, %s106
    %s123 = sphi 0, %s107
    %s133 = sphi 0, %s135
    %s136 = sphi 0, %s133
    %s137 = sphi 0, %s136
    %s153 = sphi 0, %s137
  $region4: #{flgc2d_share_forward.1} parent=0 // loop_header_branch
    %12 = sbr.rel (%p10) target = $region8
  $region5: #{flgc2d_share_forward.1} parent=0 // loop_body
    %s14 = ssub.s32 %s9, 1
    %s15 = ssub.s32 %s9, 2
    %s28 = sadd.s32 1, %s19
    %p29 = scmp.ge.s32.totalorder %s28, 1
    %s30 = scalar_select %p29, 0, %s28
    %s31 = sadd.s32 1, %s18
    %s32 = scalar_select %p29, %s31, %s18
    %p33 = scmp.ge.s32.totalorder %s32, 1
    %s34 = scalar_select %p33, 0, %s32
    %s35 = sadd.s32 1, %s17
    %s36 = scalar_select %p33, %s35, %s17
    %p37 = scmp.ge.s32.totalorder %s36, 1
    %s38 = scalar_select %p37, 0, %s36
    %s39 = sadd.s32 1, %s16
    %s40 = scalar_select %p37, %s39, %s16
    %p41 = scmp.ge.s32.totalorder %s40, 2
    %s42 = scalar_select %p41, 0, %s40
    %s43 = ssub.s32 %s17, %s38
    %s44 = ssub.s32 %s19, %s30
    %s45 = sor.u32 %s43, %s44
    %p46 = scmp.eq.s32.totalorder %s45, 0
    %s48 = sadd.s32 %s47, 1
    %s49 = scalar_select %p46, %s47, %s48
    %p52 = pneg %p46
    %p53 = scmp.eq.s32.totalorder %s9, 1
    %p54 = por %p52, %p53
    %p55 = scmp.ne.s32.totalorder %s47, %s50
    %p56 = scmp.eq.s32.totalorder %s9, 0
    %p57 = por %p55, %p56
    %p58 = scmp.ne.s32.totalorder %s47, %s50
    %p59 = scmp.eq.s32.totalorder %s14, 1
    %p60 = por %p58, %p59
    %p61 = scmp.ne.s32.totalorder %s50, %s51
    %p62 = scmp.eq.s32.totalorder %s14, 0
    %p63 = por %p61, %p62
    %p64 = scmp.ne.s32.totalorder %s50, %s51
    %p65 = scmp.eq.s32.totalorder %s15, 1
    %p66 = por %p64, %p65
    %p68 = scmp.ne.s32.totalorder %s51, %s67
    %p69 = scmp.eq.s32.totalorder %s15, 0
    %p70 = por %p68, %p69
    %s71 = ssub.s32 %s16, %s42
    %s72 = ssub.s32 %s19, %s30
    %s73 = sor.u32 %s71, %s72
    %s74 = ssub.s32 %s18, %s34
    %s75 = sor.u32 %s73, %s74
    %p76 = scmp.eq.s32.totalorder %s75, 0
    %s78 = sadd.s32 %s77, 1
    %s79 = scalar_select %p76, %s77, %s78
    %p82 = pneg %p76
    %p83 = scmp.eq.s32.totalorder %s9, 1
    %p84 = por %p82, %p83
    %p85 = scmp.ne.s32.totalorder %s77, %s80
    %p86 = scmp.eq.s32.totalorder %s9, 0
    %p87 = por %p85, %p86
    %p88 = scmp.ne.s32.totalorder %s77, %s80
    %p89 = scmp.eq.s32.totalorder %s14, 1
    %p90 = por %p88, %p89
    %p91 = scmp.ne.s32.totalorder %s80, %s81
    %p92 = scmp.eq.s32.totalorder %s14, 0
    %p93 = por %p91, %p92
    %p94 = scmp.ne.s32.totalorder %s80, %s81
    %p95 = scmp.eq.s32.totalorder %s15, 1
    %p96 = por %p94, %p95
    %p98 = scmp.ne.s32.totalorder %s81, %s97
    %p99 = scmp.eq.s32.totalorder %s15, 0
    %p100 = por %p98, %p99
    %s101 = ssub.s32 %s17, %s38
    %p102 = scmp.eq.s32.totalorder %s101, 0
    %s104 = sadd.s32 %s103, 1
    %s105 = scalar_select %p102, %s103, %s104
    %p108 = pneg %p102
    %p109 = scmp.eq.s32.totalorder %s9, 1
    %p110 = por %p108, %p109
    %p111 = scmp.ne.s32.totalorder %s103, %s106
    %p112 = scmp.eq.s32.totalorder %s9, 0
    %p113 = por %p111, %p112
    %p114 = scmp.ne.s32.totalorder %s103, %s106
    %p115 = scmp.eq.s32.totalorder %s14, 1
    %p116 = por %p114, %p115
    %p117 = scmp.ne.s32.totalorder %s106, %s107
    %p118 = scmp.eq.s32.totalorder %s14, 0
    %p119 = por %p117, %p118
    %p120 = scmp.ne.s32.totalorder %s106, %s107
    %p121 = scmp.eq.s32.totalorder %s15, 1
    %p122 = por %p120, %p121
    %p124 = scmp.ne.s32.totalorder %s107, %s123
    %p125 = scmp.eq.s32.totalorder %s15, 0
    %p126 = por %p124, %p125
    %s127 = ssub.s32 %s16, %s42
    %s128 = ssub.s32 %s17, %s38
    %s129 = sor.u32 %s127, %s128
    %s130 = ssub.s32 %s18, %s34
    %s131 = sor.u32 %s129, %s130
    %p132 = scmp.eq.s32.totalorder %s131, 0
    %s134 = sadd.s32 %s133, 1
    %s135 = scalar_select %p132, %s133, %s134
    %p138 = pneg %p132
    %p139 = scmp.eq.s32.totalorder %s9, 1
    %p140 = por %p138, %p139
    %p141 = scmp.ne.s32.totalorder %s133, %s136
    %p142 = scmp.eq.s32.totalorder %s9, 0
    %p143 = por %p141, %p142
    %p144 = scmp.ne.s32.totalorder %s133, %s136
    %p145 = scmp.eq.s32.totalorder %s14, 1
    %p146 = por %p144, %p145
    %p147 = scmp.ne.s32.totalorder %s136, %s137
    %p148 = scmp.eq.s32.totalorder %s14, 0
    %p149 = por %p147, %p148
    %p150 = scmp.ne.s32.totalorder %s136, %s137
    %p151 = scmp.eq.s32.totalorder %s15, 1
    %p152 = por %p150, %p151
    %p154 = scmp.ne.s32.totalorder %s137, %s153
    %p155 = scmp.eq.s32.totalorder %s15, 0
    %p156 = por %p154, %p155
    %p157 = scmp.le.s32.totalorder 1, %s9
    %p158 = scmp.lt.s32.totalorder %s9, 3
    %p159 = pnand %p157, %p158
    %p160 = pneg %p159
    // Predicated region
    $region9: #{flgc2d_share_forward.1} parent=5 // pred_check
      _
    $region10: #{flgc2d_share_forward.1} parent=5 // pred_check_branch
      %162 = sbr.rel (%p159) target = $region12
    $region11: #{flgc2d_share_forward.1} parent=5 // pred_region
      %s163 = ssub.s32 %s9, 1
      // Predicated region
      $region13: #{flgc2d_share_forward.1} parent=11 // pred_check
        %p164 = pneg %p63
      $region14: #{flgc2d_share_forward.1} parent=11 // pred_check_branch
        %166 = sbr.rel (%p164) target = $region16
      $region15: #{flgc2d_share_forward.1} parent=11 // pred_region
        %s167 = smul.u32 2, %s21
        %p168 = scmp.lt.s32.totalorder %s167, 1
        %s169 = scalar_select %p168, %s167, 1
        %p170 = scmp.lt.s32.totalorder %s23, 0
        %s171 = scalar_select %p170, %s23, 0
        %s172 = sadd.s32 %s171, %s169
        %s173 = smul.addr %s172, 4
        %s174 = scalar_lea.vmem %s0, %s173
        %s175 = smul.u32 2, %s21
      $region16: #{flgc2d_share_forward.1} parent=11 // pred_fallthru
        _
      // Predicated region
      $region17: #{flgc2d_share_forward.1} parent=11 // pred_check
        %p176 = pneg %p119
      $region18: #{flgc2d_share_forward.1} parent=11 // pred_check_branch
        %178 = sbr.rel (%p176) target = $region20
      $region19: #{flgc2d_share_forward.1} parent=11 // pred_region
        %s179 = smul.u32 2, %s21
        %p180 = scmp.lt.s32.totalorder %s179, 1
        %s181 = scalar_select %p180, %s179, 1
        %s182 = smul.addr %s181, 8
        %s183 = scalar_lea.vmem %s2, %s182
        %s184 = smul.u32 2, %s21
      $region20: #{flgc2d_share_forward.1} parent=11 // pred_fallthru
        _
    $region12: #{flgc2d_share_forward.1} parent=5 // pred_fallthru
      _
    %p185 = scmp.lt.s32.totalorder %s9, 2
    // Predicated region
    $region21: #{flgc2d_share_forward.1} parent=5 // pred_check
      %p186 = pneg %p185
    $region22: #{flgc2d_share_forward.1} parent=5 // pred_check_branch
      %188 = sbr.rel (%p186) target = $region24
    $region23: #{flgc2d_share_forward.1} parent=5 // pred_region
      // Predicated region
      $region25: #{flgc2d_share_forward.1} parent=23 // pred_check
        %p189 = pneg %p87
      $region26: #{flgc2d_share_forward.1} parent=23 // pred_check_branch
        %191 = sbr.rel (%p189) target = $region28
      $region27: #{flgc2d_share_forward.1} parent=23 // pred_region
        %s192 = smul.u32 9, %s19
        %s193 = smul.u32 2, %s18
        %p194 = scmp.lt.s32.totalorder %s16, 1
        %s195 = scalar_select %p194, %s16, 1
        %p196 = scmp.lt.s32.totalorder %s192, 8
        %s197 = scalar_select %p196, %s192, 8
        %p198 = scmp.lt.s32.totalorder %s193, 1
        %s199 = scalar_select %p198, %s193, 1
        %s200 = smul.addr %s197, 2
        %s201 = sadd.s32 %s199, %s200
        %s202 = smul.addr %s195, 18
        %s203 = sadd.s32 %s201, %s202
        %s204 = smul.addr %s203, 4
        %s205 = scalar_lea.vmem %s1, %s204
        %s206 = smul.u32 9, %s19
        %s207 = smul.u32 2, %s18
      $region28: #{flgc2d_share_forward.1} parent=23 // pred_fallthru
        _
    $region24: #{flgc2d_share_forward.1} parent=5 // pred_fallthru
      _
    %p208 = scmp.le.s32.totalorder 1, %s9
    %p209 = scmp.lt.s32.totalorder %s9, 3
    %p210 = pnand %p208, %p209
    %p211 = pneg %p210
    // Predicated region
    $region29: #{flgc2d_share_forward.1} parent=5 // pred_check
      _
    $region30: #{flgc2d_share_forward.1} parent=5 // pred_check_branch
      %213 = sbr.rel (%p210) target = $region32
    $region31: #{flgc2d_share_forward.1} parent=5 // pred_region
      %s214 = ssub.s32 %s9, 1
      %s215 = smul.u32 2, %s21
      %p216 = scmp.lt.s32.totalorder %s215, 1
      %s217 = scalar_select %p216, %s215, 1
      %p218 = scmp.lt.s32.totalorder %s23, 0
      %s219 = scalar_select %p218, %s23, 0
      %s220 = sadd.s32 %s219, %s217
      %s221 = smul.addr %s220, 4
      %s222 = scalar_lea.vmem %s0, %s221
      %p223 = pneg %p63
      %p224 = pneg %p60
      %s225 = smul.u32 9, %s23
      %s226 = smul.u32 2, %s22
      %p227 = scmp.lt.s32.totalorder %s20, 1
      %s228 = scalar_select %p227, %s20, 1
      %p229 = scmp.lt.s32.totalorder %s225, 8
      %s230 = scalar_select %p229, %s225, 8
      %p231 = scmp.lt.s32.totalorder %s226, 1
      %s232 = scalar_select %p231, %s226, 1
      %s233 = smul.addr %s230, 2
      %s234 = sadd.s32 %s232, %s233
      %s235 = smul.addr %s228, 18
      %s236 = sadd.s32 %s234, %s235
      %s237 = smul.addr %s236, 4
      %s238 = scalar_lea.vmem %s1, %s237
      %p239 = pneg %p93
      %p240 = pneg %p90
      %s241 = smul.u32 2, %s21
      %p242 = scmp.lt.s32.totalorder %s241, 1
      %s243 = scalar_select %p242, %s241, 1
      %s244 = smul.addr %s243, 8
      %s245 = scalar_lea.vmem %s2, %s244
      %p246 = pneg %p119
      %p247 = pneg %p116
      %p248 = pneg %p149
      %p249 = pneg %p146
      %s250 = smul.u32 2, %s21
      %s251 = smul.u32 2, %s22
      %p252 = scmp.lt.s32.totalorder %s20, 1
      %s253 = scalar_select %p252, %s20, 1
      %p254 = scmp.lt.s32.totalorder %s250, 1
      %s255 = scalar_select %p254, %s250, 1
      %p256 = scmp.lt.s32.totalorder %s251, 1
      %s257 = scalar_select %p256, %s251, 1
      %s258 = smul.addr %s255, 2
      %s259 = sadd.s32 %s257, %s258
      %s260 = smul.addr %s253, 4
      %s261 = sadd.s32 %s259, %s260
      %s262 = smul.addr %s261, 8
      %s263 = scalar_lea.vmem %s3, %s262
      %s264 = smul.u32 2, %s21
      %p265 = scmp.lt.s32.totalorder %s264, 1
      %s266 = scalar_select %p265, %s264, 1
      %p267 = scmp.lt.s32.totalorder %s23, 0
      %s268 = scalar_select %p267, %s23, 0
      %s269 = sadd.s32 %s268, %s266
      %s270 = smul.addr %s269, 4
      %s271 = scalar_lea.vmem %s0, %s270
      %s272 = smul.u32 2, %s21
      %s273 = smul.u32 9, %s23
      %s274 = smul.u32 2, %s22
      %p275 = scmp.lt.s32.totalorder %s20, 1
      %s276 = scalar_select %p275, %s20, 1
      %p277 = scmp.lt.s32.totalorder %s273, 8
      %s278 = scalar_select %p277, %s273, 8
      %p279 = scmp.lt.s32.totalorder %s274, 1
      %s280 = scalar_select %p279, %s274, 1
      %s281 = smul.addr %s278, 2
      %s282 = sadd.s32 %s280, %s281
      %s283 = smul.addr %s276, 18
      %s284 = sadd.s32 %s282, %s283
      %s285 = smul.addr %s284, 4
      %s286 = scalar_lea.vmem %s1, %s285
      %s287 = smul.u32 9, %s23
      %s288 = smul.u32 2, %s22
      %s289 = smul.u32 2, %s21
      %p290 = scmp.lt.s32.totalorder %s289, 1
      %s291 = scalar_select %p290, %s289, 1
      %s292 = smul.addr %s291, 8
      %s293 = scalar_lea.vmem %s2, %s292
      %s294 = smul.u32 2, %s21
      %s295 = smul.u32 2, %s21
      %s296 = smul.u32 2, %s22
      %p297 = scmp.lt.s32.totalorder %s20, 1
      %s298 = scalar_select %p297, %s20, 1
      %p299 = scmp.lt.s32.totalorder %s295, 1
      %s300 = scalar_select %p299, %s295, 1
      %p301 = scmp.lt.s32.totalorder %s296, 1
      %s302 = scalar_select %p301, %s296, 1
      %s303 = smul.addr %s300, 2
      %s304 = sadd.s32 %s302, %s303
      %s305 = smul.addr %s298, 4
      %s306 = sadd.s32 %s304, %s305
      %s307 = smul.addr %s306, 8
      %s308 = scalar_lea.vmem %s3, %s307
      %s309 = smul.u32 2, %s21
      %s310 = smul.u32 2, %s22
      %p312 = scmp.eq.s32.totalorder %s23, 0
      // Predicated region
      $region33: #{flgc2d_share_forward.1} parent=31 // pred_check
        %p313 = pneg %p312
      $region34: #{flgc2d_share_forward.1} parent=31 // pred_check_branch
        %315 = sbr.rel (%p313) target = $region36
      $region35: #{flgc2d_share_forward.1} parent=31 // pred_region
        %v316 = vld [vmem:[%s293] sm:$0xff]
        %v317 = vld [vmem:[%s293 + $0x8] sm:$0xff]
        %319 = vset.pattern.permute.xlu0 0
        %320 = vperm.xlu0 %319, %v316
        %v321 = vpop.permute.xlu0 %320
        %324 = vset.pattern.permute.xlu0 0
        %325 = vperm.xlu0 %324, %v317
        %v326 = vpop.permute.xlu0 %325
        %328 = vst [vmem:[%s308] sm:$0xff] %v321
        %vm329 = vcmask 556032
        %330 = vst.msk [vmem:[%s308 + $0x8] sm:$0xff] %vm329, %v321
        %331 = vst [vmem:[%s308 + $0x10] sm:$0xff] %v326
        %332 = vst.msk [vmem:[%s308 + $0x18] sm:$0xff] %vm329, %v326
      $region36: #{flgc2d_share_forward.1} parent=31 // pred_fallthru
        _
      %v333 = vld [vmem:[%s308] sm:$0xff]
      %v334 = vld [vmem:[%s308 + $0x8] sm:$0xff]
      %v335 = vld [vmem:[%s308 + $0x10] sm:$0xff]
      %v336 = vld [vmem:[%s308 + $0x18] sm:$0xff]
      %v337 = vld [vmem:[%s271] sm:$0xf]
      %v338 = vld [vmem:[%s271 + $0x4] sm:$0xf]
      %v339 = vld [vmem:[%s286] sm:$0xff]
      %v340 = vld [vmem:[%s286 + $0x8] sm:$0xff]
      %v341 = vld [vmem:[%s286 + $0x10] sm:$0xff]
      %v342 = vld [vmem:[%s286 + $0x18] sm:$0xff]
      %v343 = vld [vmem:[%s286 + $0x20] sm:$0xff]
      %v344 = vld [vmem:[%s286 + $0x28] sm:$0xff]
      %v345 = vld [vmem:[%s286 + $0x30] sm:$0xff]
      %v346 = vld [vmem:[%s286 + $0x38] sm:$0xff]
      %v347 = vld [vmem:[%s286 + $0x40] sm:$0xff]
      %v350 = vunpack.c.l.b16 %v337
      %v351 = vunpack.c.l.b16 %v338
      %v352 = vpack.c.b16 %v351, %v350
      %v362 = vunpack.c.l.b16 %v339
      %v363 = vunpack.c.h.b16 %v339
      %v364 = vunpack.c.l.b16 %v340
      %v365 = vunpack.c.h.b16 %v340
      %v366 = vunpack.c.l.b16 %v341
      %v367 = vunpack.c.h.b16 %v341
      %v368 = vunpack.c.l.b16 %v342
      %v369 = vunpack.c.h.b16 %v342
      %v370 = vunpack.c.l.b16 %v343
      %v371 = vunpack.c.h.b16 %v343
      %v372 = vunpack.c.l.b16 %v344
      %v373 = vunpack.c.h.b16 %v344
      %v374 = vunpack.c.l.b16 %v345
      %v375 = vunpack.c.h.b16 %v345
      %v376 = vunpack.c.l.b16 %v346
      %v377 = vunpack.c.h.b16 %v346
      %v378 = vunpack.c.l.b16 %v347
      %v379 = vunpack.c.h.b16 %v347
      %v380 = vpack.c.b16 %v364, %v362
      %v381 = vpack.c.b16 %v365, %v363
      %v382 = vpack.c.b16 %v368, %v366
      %v383 = vpack.c.b16 %v369, %v367
      %v384 = vpack.c.b16 %v372, %v370
      %v385 = vpack.c.b16 %v373, %v371
      %v386 = vpack.c.b16 %v376, %v374
      %v387 = vpack.c.b16 %v377, %v375
      %v388 = vpack.c.b16 %v378, %v378
      %v389 = vpack.c.b16 %v379, %v379
      %vm398 = vcmask 588800
      %v400 = vsel %vm398, %v352, 0
      %vm402 = vcmask 1043456
      %v404 = vsel %vm402, %v388, 0
      %v407 = vsel %vm402, %v389, 0
      %409 = vmatprep.subr.bf16.mxu0 %v381
      %410 = vmatpush1.bf16.msra.mxu0 %v380
      %411 = vmatprep.subr.bf16.mxu0 %v383
      %412 = vmatpush1.bf16.msra.mxu0 %v382
      %413 = vmatprep.subr.bf16.mxu0 %v385
      %414 = vmatpush1.bf16.msra.mxu0 %v384
      %415 = vmatprep.subr.bf16.mxu0 %v387
      %416 = vmatpush1.bf16.msra.mxu0 %v386
      %417 = vmatprep.subr.bf16.mxu0 %v407
      %418 = vmatpush1.bf16.msra.mxu0 %v404
      %419 = vmatprep.subr.bf16.mxu0 0
      %420 = vmatpush1.bf16.msra.mxu0 0
      %421 = vmatprep.subr.bf16.mxu0 0
      %422 = vmatpush1.bf16.msra.mxu0 0
      %423 = vmatprep.subr.bf16.mxu0 0
      %424 = vmatpush1.bf16.msra.mxu0 0
      %425 = vmatprep.subr.bf16.mxu0 0
      %426 = vmatpush1.bf16.msra.mxu0 0
      %427 = vmatprep.subr.bf16.mxu0 0
      %428 = vmatpush1.bf16.msra.mxu0 0
      %429 = vmatprep.subr.bf16.mxu0 0
      %430 = vmatpush1.bf16.msra.mxu0 0
      %431 = vmatprep.subr.bf16.mxu0 0
      %432 = vmatpush1.bf16.msra.mxu0 0
      %433 = vmatprep.subr.bf16.mxu0 0
      %434 = vmatpush1.bf16.msra.mxu0 0
      %435 = vmatprep.subr.bf16.mxu0 0
      %436 = vmatpush1.bf16.msra.mxu0 0
      %437 = vmatprep.subr.bf16.mxu0 0
      %438 = vmatpush1.bf16.msra.mxu0 0
      %439 = vmatprep.subr.bf16.mxu0 0
      %440 = vmatpush1.bf16.msra.mxu0 0
      %441 = vmatprep.mubr.bf16.mxu0 0
      %442 = vmatmul.mubr.bf16.gmra.mrb[0].mxu0 %v400
      %v443 = vpop.f32.mrb[0].mxu0
      %v444 = vadd.f32 0.0, %v443
      %v445 = vpop.f32.mrb[0].mxu0
      %v446 = vadd.f32 0.0, %v445
      %v447 = vpop.f32.mrb[0].mxu0
      %v448 = vadd.f32 0.0, %v447
      %v449 = vpop.f32.mrb[0].mxu0
      %v450 = vadd.f32 0.0, %v449
      %451 = vdwg.mxu0
      %v452 = vadd.f32 %v333, %v444
      %v453 = vadd.f32 %v334, %v446
      %v454 = vadd.f32 %v335, %v448
      %v455 = vadd.f32 %v336, %v450
      %456 = vst [vmem:[%s308] sm:$0xff] %v452
      %vm457 = vcmask 556032
      %458 = vst.msk [vmem:[%s308 + $0x8] sm:$0xff] %vm457, %v453
      %459 = vst [vmem:[%s308 + $0x10] sm:$0xff] %v454
      %460 = vst.msk [vmem:[%s308 + $0x18] sm:$0xff] %vm457, %v455
      %s461 = smul.u32 2, %s21
      %s462 = smul.u32 2, %s22
      %p463 = scmp.lt.s32.totalorder %s20, 1
      %s464 = scalar_select %p463, %s20, 1
      %p465 = scmp.lt.s32.totalorder %s461, 1
      %s466 = scalar_select %p465, %s461, 1
      %p467 = scmp.lt.s32.totalorder %s462, 1
      %s468 = scalar_select %p467, %s462, 1
      %s469 = smul.addr %s466, 2
      %s470 = sadd.s32 %s468, %s469
      %s471 = smul.addr %s464, 4
      %s472 = sadd.s32 %s470, %s471
      %s473 = smul.addr %s472, 8
      %s474 = scalar_lea.vmem %s3, %s473
      // Predicated region
      $region37: #{flgc2d_share_forward.1} parent=31 // pred_check
        %p475 = pneg %p146
      $region38: #{flgc2d_share_forward.1} parent=31 // pred_check_branch
        %477 = sbr.rel (%p475) target = $region40
      $region39: #{flgc2d_share_forward.1} parent=31 // pred_region
        %s478 = smul.u32 2, %s21
        %s479 = smul.u32 2, %s22
      $region40: #{flgc2d_share_forward.1} parent=31 // pred_fallthru
        _
    $region32: #{flgc2d_share_forward.1} parent=5 // pred_fallthru
      _
    %p480 = scmp.le.s32.totalorder 2, %s9
    // Predicated region
    $region41: #{flgc2d_share_forward.1} parent=5 // pred_check
      %p481 = pneg %p480
    $region42: #{flgc2d_share_forward.1} parent=5 // pred_check_branch
      %483 = sbr.rel (%p481) target = $region44
    $region43: #{flgc2d_share_forward.1} parent=5 // pred_region
      %s484 = ssub.s32 %s9, 2
      // Predicated region
      $region45: #{flgc2d_share_forward.1} parent=43 // pred_check
        %p485 = pneg %p152
      $region46: #{flgc2d_share_forward.1} parent=43 // pred_check_branch
        %487 = sbr.rel (%p485) target = $region48
      $region47: #{flgc2d_share_forward.1} parent=43 // pred_region
        %s488 = smul.u32 2, %s25
        %s489 = smul.u32 2, %s26
        %p490 = scmp.lt.s32.totalorder %s24, 1
        %s491 = scalar_select %p490, %s24, 1
        %p492 = scmp.lt.s32.totalorder %s488, 1
        %s493 = scalar_select %p492, %s488, 1
        %p494 = scmp.lt.s32.totalorder %s489, 1
        %s495 = scalar_select %p494, %s489, 1
        %s496 = smul.addr %s493, 2
        %s497 = sadd.s32 %s495, %s496
        %s498 = smul.addr %s491, 4
        %s499 = sadd.s32 %s497, %s498
        %s500 = smul.addr %s499, 8
        %s501 = scalar_lea.vmem %s3, %s500
      $region48: #{flgc2d_share_forward.1} parent=43 // pred_fallthru
        _
    $region44: #{flgc2d_share_forward.1} parent=5 // pred_fallthru
      _
  $region6: #{flgc2d_share_forward.1} parent=0 // loop_footer
    %s13 = sadd.s32 1, %s9
  $region7: #{flgc2d_share_forward.1} parent=0 // loop_footer_branch
    %8 = sbr.rel target = $region3
  $region8: #{flgc2d_share_forward.1} parent=0 // loop_exit
    _

</llo_original>
